<compile_context>
chip_gen: v5e
topology: v5e:2x2
jax: 0.10.0
libtpu: 0.0.40
codegen_flags: <defaults>
</compile_context>

<pallas_src>
import jax
import jax.numpy as jnp
from jax.experimental import pallas as pl
from jax.experimental.pallas import tpu as pltpu

_LANE = 128
_UNROLL_THRESHOLD = 16   # above this many clean chunks, use fori_loop(unroll=8)


def _choose_chunk_lanes(C):
    """Chunk width (lanes). Keeps 2 local accumulators + live chunk within a
    comfortable vreg budget (~C*CHUNK <= 8K elems); for very large C the
    compiler may spill the locals to VMEM, which degenerates to chunked RMW."""
    lanes = (8192 // max(C, 1)) // _LANE * _LANE
    return int(max(_LANE, min(1024, lanes)))


def _choose_tile_lanes(C, HW, tile_bytes, chunk, itemsize):
    """Spatial tile width T (lanes): ~tile_bytes per (C, T) block, a multiple
    of `chunk`, capped at HW rounded up to a chunk multiple."""
    lanes = (tile_bytes // (C * itemsize)) // chunk * chunk
    lanes = max(chunk, lanes)
    hw_lanes = pl.cdiv(HW, chunk) * chunk
    return int(min(lanes, hw_lanes))


def _make_cae_kernel(HW, T, chunk, n_safe):
    n_chunks = T // chunk
    inv_hw = 1.0 / float(HW)

    def kernel(x_ref, w1_ref, w2_ref, o_ref, sum_acc, max_acc):
        # x_ref: (C, T) tile   w1: (Ch, C)   w2: (C, Ch)   o: (C, 1)
        k = pl.program_id(1)
        last = pl.num_programs(1) - 1

        @pl.when(k == 0)
        def _init():
            sum_acc[...] = jnp.zeros_like(sum_acc)
            max_acc[...] = jnp.full_like(max_acc, -jnp.inf)

        # One scratch read per grid step; everything else stays in vregs.
        s_loc = sum_acc[...]
        m_loc = max_acc[...]

        # --- Clean prefix: chunks that can never contain padding. ----------
        if 0 < n_safe <= _UNROLL_THRESHOLD:
            for j in range(n_safe):
                c = x_ref[:, j * chunk:(j + 1) * chunk].astype(jnp.float32)
                s_loc = s_loc + c
                m_loc = jnp.maximum(m_loc, c)
        elif n_safe > _UNROLL_THRESHOLD:
            def body(j, carry):
                s, m = carry
                off = pl.multiple_of(j * chunk, chunk)
                c = x_ref[:, pl.ds(off, chunk)].astype(jnp.float32)
                return s + c, jnp.maximum(m, c)
            s_loc, m_loc = jax.lax.fori_loop(
                0, n_safe, body, (s_loc, m_loc), unroll=8)

        # --- Tail: only chunks that may overrun HW (in the last tile) get the
        # mask; the mask evaluates all-true for earlier tiles so it is also
        # correct there. Lane iota is built once, outside the loop. ----------
        if n_safe < n_chunks:
            lane = jax.lax.broadcasted_iota(jnp.int32, (1, chunk), 1)
            base = k * T
            for j in range(n_safe, n_chunks):
                c = x_ref[:, j * chunk:(j + 1) * chunk].astype(jnp.float32)
                valid = (base + j * chunk + lane) < HW          # (1, chunk)
                s_loc = s_loc + jnp.where(valid, c, 0.0)
                m_loc = jnp.maximum(m_loc, jnp.where(valid, c, -jnp.inf))

        # Carry partials to the next spatial step (skip the useless store on
        # the last step — the epilogue consumes the locals directly).
        @pl.when(k != last)
        def _carry():
            sum_acc[...] = s_loc
            max_acc[...] = m_loc

        @pl.when(k == last)
        def _epilogue():
            # Single cross-lane reduce of the partials (XLU, once per batch).
            avg = jnp.sum(s_loc, axis=1, keepdims=True) * inv_hw   # (C, 1)
            mx = jnp.max(m_loc, axis=1, keepdims=True)             # (C, 1)
            # Pack [avg | max] into (C, 2) so the shared MLP runs once
            # (2 MXU pushes instead of 4). Built with a select, not concat.
            col = jax.lax.broadcasted_iota(jnp.int32, (avg.shape[0], 2), 1)
            pooled = jnp.where(col == 0, avg, mx)                  # (C, 2)
            h = jnp.maximum(
                jnp.dot(w1_ref[...], pooled,
                        preferred_element_type=jnp.float32), 0.0)  # (Ch, 2)
            y2 = jnp.dot(w2_ref[...], h,
                         preferred_element_type=jnp.float32)       # (C, 2)
            y = jnp.sum(y2, axis=1, keepdims=True)   # avg_out + max_out (C,1)
            o_ref[...] = jax.nn.sigmoid(y).astype(o_ref.dtype)

    return kernel


def channel_attention_enhancement(x, w1, w2, *, tile_bytes=4 << 20):
    """x: (B, C, H, W) f32/bf16; w1: (C//16, C); w2: (C, C//16).
    Returns sigmoid channel attention of shape (B, C, 1, 1)."""
    B, C, H, W = x.shape
    Ch = w1.shape[0]
    HW = H * W
    itemsize = jnp.dtype(x.dtype).itemsize

    chunk = _choose_chunk_lanes(C)
    T = _choose_tile_lanes(C, HW, tile_bytes, chunk, itemsize)
    n_tiles = int(pl.cdiv(HW, T))
    n_chunks = T // chunk
    # Chunks (within a tile) that can never reach past HW, even in the last
    # tile: a static prefix of the chunk loop.
    n_safe = max(0, min(n_chunks, (HW - (n_tiles - 1) * T) // chunk))

    xr = x.reshape(B, C, HW)
    kernel = _make_cae_kernel(HW, T, chunk, n_safe)

    out = pl.pallas_call(
        kernel,
        out_shape=jax.ShapeDtypeStruct((B, C, 1), x.dtype),
        grid_spec=pltpu.PrefetchScalarGridSpec(
            num_scalar_prefetch=0,
            grid=(B, n_tiles),
            in_specs=[
                pl.BlockSpec((pl.Squeezed(), C, T), lambda b, k: (b, 0, k)),
                pl.BlockSpec((Ch, C), lambda b, k: (0, 0)),   # VMEM-resident
                pl.BlockSpec((C, Ch), lambda b, k: (0, 0)),   # weights
            ],
            out_specs=pl.BlockSpec((pl.Squeezed(), C, 1),
                                   lambda b, k: (b, 0, 0)),
            scratch_shapes=[
                pltpu.VMEM((C, chunk), jnp.float32),   # running sum partials
                pltpu.VMEM((C, chunk), jnp.float32),   # running max partials
            ],
        ),
        compiler_params=pltpu.CompilerParams(
            dimension_semantics=("parallel", "arbitrary"),
            vmem_limit_bytes=32 << 20),
    )(xr, w1, w2)
    return out.reshape(B, C, 1, 1)


def reference(x, w1, w2):
    # Pure-JAX reference mirroring the PyTorch forward.
    xf = x.astype(jnp.float32)
    avg = jnp.mean(xf, axis=(2, 3))                      # (B, C)
    mx = jnp.max(xf, axis=(2, 3))                        # (B, C)

    def fc(v):
        h = jnp.maximum(v @ w1.T, 0.0)
        return h @ w2.T

    return jax.nn.sigmoid(fc(avg) + fc(mx))[:, :, None, None]


if __name__ == "__main__":
    key = jax.random.PRNGKey(0)

    def run_case(B, C, H, W, tile_bytes=4 << 20, seed_offset=0):
        Ch = max(C // 16, 1)
        kx, k1, k2 = jax.random.split(jax.random.fold_in(key, seed_offset), 3)
        x = jax.random.normal(kx, (B, C, H, W), dtype=jnp.float32)
        # Conv2d 1x1 (no bias) weights squeezed to matrices.
        w1 = 0.1 * jax.random.normal(k1, (Ch, C), dtype=jnp.float32)
        w2 = 0.1 * jax.random.normal(k2, (C, Ch), dtype=jnp.float32)

        out = channel_attention_enhancement(x, w1, w2, tile_bytes=tile_bytes)
        out = jax.block_until_ready(out)
        ref = reference(x, w1, w2)
        assert out.shape == (B, C, 1, 1)
        assert jnp.allclose(out, ref, atol=1e-5, rtol=1e-5), (
            f"mismatch vs reference for shape {(B, C, H, W)}")

    # 1) Single spatial tile, single chunk, no masking (primary small-shape check).
    run_case(2, 32, 16, 16)
    # 2) Multi-tile spatial reduction (scratch carry + init/epilogue under pl.when).
    run_case(2, 32, 32, 32, tile_bytes=64 * 1024, seed_offset=1)
    # 3) Ragged spatial size, multi-tile -> masked tail chunks (0 / -inf).
    run_case(1, 32, 24, 24, tile_bytes=64 * 1024, seed_offset=2)
    # 4) Long clean prefix -> fori_loop(unroll=8) path + one masked tail chunk.
    run_case(1, 32, 72, 72, seed_offset=3)

    print("KERNEL_OK")
</pallas_src>

<mosaic_0001>
module attributes {stable_mosaic.version = 11 : i64} {
  func.func @kernel(%arg0: i32, %arg1: i32, %arg2: memref<1x32x256xf32, #tpu.memory_space<vmem>>, %arg3: memref<2x32xf32, #tpu.memory_space<vmem>>, %arg4: memref<32x2xf32, #tpu.memory_space<vmem>>, %arg5: memref<1x32x1xf32, #tpu.memory_space<vmem>>, %arg6: memref<32x256xf32, #tpu.memory_space<vmem>>, %arg7: memref<32x256xf32, #tpu.memory_space<vmem>>) attributes {dimension_semantics = [#tpu.dimension_semantics<parallel>, #tpu.dimension_semantics<arbitrary>], iteration_bounds = array<i64: 2, 1>, scalar_prefetch = 0 : i64, scratch_operands = 2 : i64, tpu.core_type = #tpu.core_type<tc>, window_params = [{transform_indices = @transform_0, window_bounds = array<i64: 1, 32, 256>}, {pipeline_mode = #tpu.pipeline_mode<synchronous>, transform_indices = @transform_1, window_bounds = array<i64: 2, 32>}, {pipeline_mode = #tpu.pipeline_mode<synchronous>, transform_indices = @transform_2, window_bounds = array<i64: 32, 2>}, {transform_indices = @transform_3, window_bounds = array<i64: 1, 32, 1>}]} {
    %c0_i32 = arith.constant 0 : i32
    %0 = arith.cmpi eq, %arg1, %c0_i32 : i32
    %1 = arith.extui %0 : i1 to i32
    %c0_i32_0 = arith.constant 0 : i32
    %2 = arith.cmpi ne, %1, %c0_i32_0 : i32
    scf.if %2 {
      %cst = arith.constant 0.000000e+00 : f32
      %15 = vector.broadcast %cst : f32 to vector<32x256xf32>
      %c0_11 = arith.constant 0 : index
      %c0_12 = arith.constant 0 : index
      %16 = vector.load %arg6[%c0_11, %c0_12] : memref<32x256xf32, #tpu.memory_space<vmem>>, vector<32x256xf32>
      tpu.vector_store %arg6[%c0_11, %c0_12], %15 {strides = array<i32>} : memref<32x256xf32, #tpu.memory_space<vmem>>, vector<32x256xf32>,
      %cst_13 = arith.constant 0xFF800000 : f32
      %17 = vector.broadcast %cst_13 : f32 to vector<32x256xf32>
      %c0_14 = arith.constant 0 : index
      %c0_15 = arith.constant 0 : index
      %18 = vector.load %arg7[%c0_14, %c0_15] : memref<32x256xf32, #tpu.memory_space<vmem>>, vector<32x256xf32>
      tpu.vector_store %arg7[%c0_14, %c0_15], %17 {strides = array<i32>} : memref<32x256xf32, #tpu.memory_space<vmem>>, vector<32x256xf32>,
    } else {
    }
    %c0 = arith.constant 0 : index
    %c0_1 = arith.constant 0 : index
    %3 = vector.load %arg6[%c0, %c0_1] : memref<32x256xf32, #tpu.memory_space<vmem>>, vector<32x256xf32>
    %c0_2 = arith.constant 0 : index
    %c0_3 = arith.constant 0 : index
    %4 = vector.load %arg7[%c0_2, %c0_3] : memref<32x256xf32, #tpu.memory_space<vmem>>, vector<32x256xf32>
    %c0_4 = arith.constant 0 : index
    %c0_5 = arith.constant 0 : index
    %c0_6 = arith.constant 0 : index
    %5 = vector.load %arg2[%c0_4, %c0_5, %c0_6] : memref<1x32x256xf32, #tpu.memory_space<vmem>>, vector<1x32x256xf32>
    %6 = vector.shape_cast %5 : vector<1x32x256xf32> to vector<32x256xf32>
    %7 = arith.addf %3, %6 : vector<32x256xf32>
    %8 = arith.maximumf %4, %6 : vector<32x256xf32>
    %c0_i32_7 = arith.constant 0 : i32
    %9 = arith.cmpi ne, %arg1, %c0_i32_7 : i32
    %10 = arith.extui %9 : i1 to i32
    %c0_i32_8 = arith.constant 0 : i32
    %11 = arith.cmpi ne, %10, %c0_i32_8 : i32
    scf.if %11 {
      %c0_11 = arith.constant 0 : index
      %c0_12 = arith.constant 0 : index
      %15 = vector.load %arg6[%c0_11, %c0_12] : memref<32x256xf32, #tpu.memory_space<vmem>>, vector<32x256xf32>
      tpu.vector_store %arg6[%c0_11, %c0_12], %7 {strides = array<i32>} : memref<32x256xf32, #tpu.memory_space<vmem>>, vector<32x256xf32>,
      %c0_13 = arith.constant 0 : index
      %c0_14 = arith.constant 0 : index
      %16 = vector.load %arg7[%c0_13, %c0_14] : memref<32x256xf32, #tpu.memory_space<vmem>>, vector<32x256xf32>
      tpu.vector_store %arg7[%c0_13, %c0_14], %8 {strides = array<i32>} : memref<32x256xf32, #tpu.memory_space<vmem>>, vector<32x256xf32>,
    } else {
    }
    %c0_i32_9 = arith.constant 0 : i32
    %12 = arith.cmpi eq, %arg1, %c0_i32_9 : i32
    %13 = arith.extui %12 : i1 to i32
    %c0_i32_10 = arith.constant 0 : i32
    %14 = arith.cmpi ne, %13, %c0_i32_10 : i32
    scf.if %14 {
      %cst = arith.constant dense<0.000000e+00> : vector<32xf32>
      %15 = vector.multi_reduction <add>, %7, %cst [1] : vector<32x256xf32> to vector<32xf32>
      %16 = vector.shape_cast %15 : vector<32xf32> to vector<32x1xf32>
      %cst_11 = arith.constant 3.906250e-03 : f32
      %17 = vector.broadcast %cst_11 : f32 to vector<32x1xf32>
      %18 = arith.mulf %16, %17 : vector<32x1xf32>
      %cst_12 = arith.constant dense<0xFF800000> : vector<32xf32>
      %19 = vector.multi_reduction <maximumf>, %8, %cst_12 [1] : vector<32x256xf32> to vector<32xf32>
      %20 = vector.shape_cast %19 : vector<32xf32> to vector<32x1xf32>
      %21 = tpu.iota {dimensions = array<i32: 1>} : vector<32x2xi32>
      %c0_i32_13 = arith.constant 0 : i32
      %22 = vector.broadcast %c0_i32_13 : i32 to vector<32x2xi32>
      %23 = arith.cmpi eq, %21, %22 : vector<32x2xi32>
      %24 = vector.shape_cast %18 : vector<32x1xf32> to vector<32x1xf32>
      %25 = vector.broadcast %24 : vector<32x1xf32> to vector<32x2xf32>
      %26 = vector.shape_cast %20 : vector<32x1xf32> to vector<32x1xf32>
      %27 = vector.broadcast %26 : vector<32x1xf32> to vector<32x2xf32>
      %28 = arith.select %23, %25, %27 : vector<32x2xi1>, vector<32x2xf32>
      %c0_14 = arith.constant 0 : index
      %c0_15 = arith.constant 0 : index
      %29 = vector.load %arg3[%c0_14, %c0_15] : memref<2x32xf32, #tpu.memory_space<vmem>>, vector<2x32xf32>
      %cst_16 = arith.constant dense<0.000000e+00> : vector<2x2xf32>
      %30 = tpu.matmul %29, %28, %cst_16 {dimension_numbers = #tpu.dot_dimension_numbers<[1], [0], [0], [1], [0, 0, 1, 1], [], []>} : vector<2x32xf32>, vector<32x2xf32>, vector<2x2xf32> -> vector<2x2xf32>
      %cst_17 = arith.constant 0.000000e+00 : f32
      %31 = vector.broadcast %cst_17 : f32 to vector<2x2xf32>
      %32 = arith.maximumf %30, %31 : vector<2x2xf32>
      %c0_18 = arith.constant 0 : index
      %c0_19 = arith.constant 0 : index
      %33 = vector.load %arg4[%c0_18, %c0_19] : memref<32x2xf32, #tpu.memory_space<vmem>>, vector<32x2xf32>
      %cst_20 = arith.constant dense<0.000000e+00> : vector<32x2xf32>
      %34 = tpu.matmul %33, %32, %cst_20 {dimension_numbers = #tpu.dot_dimension_numbers<[1], [0], [0], [1], [0, 0, 1, 1], [], []>} : vector<32x2xf32>, vector<2x2xf32>, vector<32x2xf32> -> vector<32x2xf32>
      %cst_21 = arith.constant dense<0.000000e+00> : vector<32xf32>
      %35 = vector.multi_reduction <add>, %34, %cst_21 [1] : vector<32x2xf32> to vector<32xf32>
      %36 = vector.shape_cast %35 : vector<32xf32> to vector<32x1xf32>
      %37 = arith.negf %36 : vector<32x1xf32>
      %38 = math.exp %37 : vector<32x1xf32>
      %cst_22 = arith.constant 1.000000e+00 : f32
      %39 = vector.broadcast %cst_22 : f32 to vector<32x1xf32>
      %40 = arith.addf %39, %38 : vector<32x1xf32>
      %41 = arith.divf %39, %40 : vector<32x1xf32>
      %c0_23 = arith.constant 0 : index
      %c0_24 = arith.constant 0 : index
      %c0_25 = arith.constant 0 : index
      %42 = vector.load %arg5[%c0_23, %c0_24, %c0_25] : memref<1x32x1xf32, #tpu.memory_space<vmem>>, vector<1x32x1xf32>
      %43 = vector.shape_cast %42 : vector<1x32x1xf32> to vector<32x1xf32>
      %44 = vector.shape_cast %41 : vector<32x1xf32> to vector<1x32x1xf32>
      tpu.vector_store %arg5[%c0_23, %c0_24, %c0_25], %44 {strides = array<i32>} : memref<1x32x1xf32, #tpu.memory_space<vmem>>, vector<1x32x1xf32>,
    } else {
    }
    return
  }
  func.func @transform_0(%arg0: i32, %arg1: i32) -> (i32, i32, i32) {
    %c0_i32 = arith.constant 0 : i32
    %c0_i32_0 = arith.constant 0 : i32
    return %arg0, %c0_i32, %arg1 : i32, i32, i32
  }
  func.func @transform_1(%arg0: i32, %arg1: i32) -> (i32, i32) {
    %c0_i32 = arith.constant 0 : i32
    %c0_i32_0 = arith.constant 0 : i32
    %c0_i32_1 = arith.constant 0 : i32
    return %c0_i32, %c0_i32_0 : i32, i32
  }
  func.func @transform_2(%arg0: i32, %arg1: i32) -> (i32, i32) {
    %c0_i32 = arith.constant 0 : i32
    %c0_i32_0 = arith.constant 0 : i32
    %c0_i32_1 = arith.constant 0 : i32
    return %c0_i32, %c0_i32_0 : i32, i32
  }
  func.func @transform_3(%arg0: i32, %arg1: i32) -> (i32, i32, i32) {
    %c0_i32 = arith.constant 0 : i32
    %c0_i32_0 = arith.constant 0 : i32
    %c0_i32_1 = arith.constant 0 : i32
    return %arg0, %c0_i32, %c0_i32_0 : i32, i32, i32
  }
}

</mosaic_0001>

<llo_original>
// kernel: tpu_custom_call.1
$region0: #{tpu_custom_call.1}
  #allocation0 [shape = 'u32[]', space=smem, size = 0x4, offset = 0x4, fixed_abs, tag = 'smem constant byte address 0x4 - core index']
  #allocation1 [shape = 'u32[72,128]{1,0:T(1,128)}', space=vmem, size = 0x9000, scoped, tag = 'internal scratch']
  #allocation2 [shape = 'f32[32,256]{1,0:T(8,128)}', space=vmem, size = 0x8000, scoped, tag = 'scratch operand']
  #allocation3 [shape = 'f32[32,256]{1,0:T(8,128)}', space=vmem, size = 0x8000, scoped, tag = 'scratch operand']
  %s0 = inlined_call_operand.hbm [shape: f32[2,32,256], index: 0, kind: input, shape index: {}]
  %s1 = inlined_call_operand.vmem [shape: f32[2,32], index: 1, kind: input, shape index: {}]
  %s2 = inlined_call_operand.vmem [shape: f32[32,2], index: 2, kind: input, shape index: {}]
  %s3 = inlined_call_operand.vmem [shape: f32[2,32,1], index: 3, kind: output, shape index: {}]
  %s4 = sld [smem:[#allocation0]]
  $region61: #{tpu_custom_call.1} parent=0
    _
  %s6 = ssub.s32 1, %s4
  %s7 = scalar_select 0, %s6, %s4
  $region1: #{tpu_custom_call.1} parent=0
    #allocation4 [shape = 'u8[65536]{0}', space=vmem, size = 0x10000, scoped, tag = 'input window, operand 0']
    #allocation5 [shape = 's32[2]{0}', space=sflag, size = 0x8, scoped, tag = 'scoped memory for tpu_custom_call.1']
    %8 = vsyncpa [#allocation5], 0
    %s9 = scalar_lea.sflag [#allocation5], 1
    %10 = vsyncpa %s9, 0
    loop: start=0, step=1, limit=4
    $region2: #{tpu_custom_call.1} parent=1 // loop_pre_header
      _
    $region3: #{tpu_custom_call.1} parent=1 // loop_header
      %s12 = sphi 0, %s16
      %p13 = scmp.ge.s32.totalorder %s12, 4
      %s19 = sphi 0, %s31
      %s20 = sphi 0, %s27
      %s21 = sphi 0, %s19
      %s22 = sphi 0, %s20
      %s23 = sphi 0, %s21
      %s24 = sphi 0, %s22
      %s36 = sphi 0, %s38
      %s39 = sphi 0, %s36
      %s40 = sphi 0, %s39
      %s56 = sphi 0, %s40
      %s60 = sphi 0, %s60
      %s62 = sphi 0, %s60
      %s63 = sphi 0, %s62
      %s77 = sphi 0, %s63
      %s81 = sphi 0, %s81
      %s83 = sphi 0, %s81
      %s84 = sphi 0, %s83
      %s98 = sphi 0, %s84
      %s104 = sphi 0, %s106
      %s107 = sphi 0, %s104
      %s108 = sphi 0, %s107
      %s124 = sphi 0, %s108
    $region4: #{tpu_custom_call.1} parent=1 // loop_header_branch
      %15 = sbr.rel (%p13) target = $region8
    $region5: #{tpu_custom_call.1} parent=1 // loop_body
      %s17 = ssub.s32 %s12, 1
      %s18 = ssub.s32 %s12, 2
      %s25 = sadd.s32 1, %s20
      %p26 = scmp.ge.s32.totalorder %s25, 1
      %s27 = scalar_select %p26, 0, %s25
      %s28 = sadd.s32 1, %s19
      %s29 = scalar_select %p26, %s28, %s19
      %p30 = scmp.ge.s32.totalorder %s29, 2
      %s31 = scalar_select %p30, 0, %s29
      %s32 = ssub.s32 %s19, %s31
      %s33 = ssub.s32 %s20, %s27
      %s34 = sor.u32 %s32, %s33
      %p35 = scmp.eq.s32.totalorder %s34, 0
      %s37 = sadd.s32 %s36, 1
      %s38 = scalar_select %p35, %s36, %s37
      %p41 = pneg %p35
      %p42 = scmp.eq.s32.totalorder %s12, 1
      %p43 = por %p41, %p42
      %p44 = scmp.ne.s32.totalorder %s36, %s39
      %p45 = scmp.eq.s32.totalorder %s12, 0
      %p46 = por %p44, %p45
      %p47 = scmp.ne.s32.totalorder %s36, %s39
      %p48 = scmp.eq.s32.totalorder %s17, 1
      %p49 = por %p47, %p48
      %p50 = scmp.ne.s32.totalorder %s39, %s40
      %p51 = scmp.eq.s32.totalorder %s17, 0
      %p52 = por %p50, %p51
      %p53 = scmp.ne.s32.totalorder %s39, %s40
      %p54 = scmp.eq.s32.totalorder %s18, 1
      %p55 = por %p53, %p54
      %p57 = scmp.ne.s32.totalorder %s40, %s56
      %p58 = scmp.eq.s32.totalorder %s18, 0
      %p59 = por %p57, %p58
      %s61 = sadd.s32 %s60, 1
      %p64 = scmp.eq.s32.totalorder %s12, 1
      %p65 = scmp.ne.s32.totalorder %s60, %s62
      %p66 = scmp.eq.s32.totalorder %s12, 0
      %p67 = por %p65, %p66
      %p68 = scmp.ne.s32.totalorder %s60, %s62
      %p69 = scmp.eq.s32.totalorder %s17, 1
      %p70 = por %p68, %p69
      %p71 = scmp.ne.s32.totalorder %s62, %s63
      %p72 = scmp.eq.s32.totalorder %s17, 0
      %p73 = por %p71, %p72
      %p74 = scmp.ne.s32.totalorder %s62, %s63
      %p75 = scmp.eq.s32.totalorder %s18, 1
      %p76 = por %p74, %p75
      %p78 = scmp.ne.s32.totalorder %s63, %s77
      %p79 = scmp.eq.s32.totalorder %s18, 0
      %p80 = por %p78, %p79
      %s82 = sadd.s32 %s81, 1
      %p85 = scmp.eq.s32.totalorder %s12, 1
      %p86 = scmp.ne.s32.totalorder %s81, %s83
      %p87 = scmp.eq.s32.totalorder %s12, 0
      %p88 = por %p86, %p87
      %p89 = scmp.ne.s32.totalorder %s81, %s83
      %p90 = scmp.eq.s32.totalorder %s17, 1
      %p91 = por %p89, %p90
      %p92 = scmp.ne.s32.totalorder %s83, %s84
      %p93 = scmp.eq.s32.totalorder %s17, 0
      %p94 = por %p92, %p93
      %p95 = scmp.ne.s32.totalorder %s83, %s84
      %p96 = scmp.eq.s32.totalorder %s18, 1
      %p97 = por %p95, %p96
      %p99 = scmp.ne.s32.totalorder %s84, %s98
      %p100 = scmp.eq.s32.totalorder %s18, 0
      %p101 = por %p99, %p100
      %s102 = ssub.s32 %s19, %s31
      %p103 = scmp.eq.s32.totalorder %s102, 0
      %s105 = sadd.s32 %s104, 1
      %s106 = scalar_select %p103, %s104, %s105
      %p109 = pneg %p103
      %p110 = scmp.eq.s32.totalorder %s12, 1
      %p111 = por %p109, %p110
      %p112 = scmp.ne.s32.totalorder %s104, %s107
      %p113 = scmp.eq.s32.totalorder %s12, 0
      %p114 = por %p112, %p113
      %p115 = scmp.ne.s32.totalorder %s104, %s107
      %p116 = scmp.eq.s32.totalorder %s17, 1
      %p117 = por %p115, %p116
      %p118 = scmp.ne.s32.totalorder %s107, %s108
      %p119 = scmp.eq.s32.totalorder %s17, 0
      %p120 = por %p118, %p119
      %p121 = scmp.ne.s32.totalorder %s107, %s108
      %p122 = scmp.eq.s32.totalorder %s18, 1
      %p123 = por %p121, %p122
      %p125 = scmp.ne.s32.totalorder %s108, %s124
      %p126 = scmp.eq.s32.totalorder %s18, 0
      %p127 = por %p125, %p126
      %p128 = scmp.le.s32.totalorder 1, %s12
      %p129 = scmp.lt.s32.totalorder %s12, 3
      %p130 = pnand %p128, %p129
      %p131 = pneg %p130
      // Predicated region
      $region9: #{tpu_custom_call.1} parent=5 // pred_check
        _
      $region10: #{tpu_custom_call.1} parent=5 // pred_check_branch
        %133 = sbr.rel (%p130) target = $region12
      $region11: #{tpu_custom_call.1} parent=5 // pred_region
        %s134 = ssub.s32 %s12, 1
        // Predicated region
        $region13: #{tpu_custom_call.1} parent=11 // pred_check
          %p135 = pneg %p73
        $region14: #{tpu_custom_call.1} parent=11 // pred_check_branch
          %137 = sbr.rel (%p135) target = $region16
        $region15: #{tpu_custom_call.1} parent=11 // pred_region
          _
        $region16: #{tpu_custom_call.1} parent=11 // pred_fallthru
          _
        // Predicated region
        $region17: #{tpu_custom_call.1} parent=11 // pred_check
          %p138 = pneg %p94
        $region18: #{tpu_custom_call.1} parent=11 // pred_check_branch
          %140 = sbr.rel (%p138) target = $region20
        $region19: #{tpu_custom_call.1} parent=11 // pred_region
          _
        $region20: #{tpu_custom_call.1} parent=11 // pred_fallthru
          _
      $region12: #{tpu_custom_call.1} parent=5 // pred_fallthru
        _
      %p141 = scmp.lt.s32.totalorder %s12, 2
      // Predicated region
      $region21: #{tpu_custom_call.1} parent=5 // pred_check
        %p142 = pneg %p141
      $region22: #{tpu_custom_call.1} parent=5 // pred_check_branch
        %144 = sbr.rel (%p142) target = $region24
      $region23: #{tpu_custom_call.1} parent=5 // pred_region
        // Predicated region
        $region25: #{tpu_custom_call.1} parent=23 // pred_check
          %p145 = pneg %p46
        $region26: #{tpu_custom_call.1} parent=23 // pred_check_branch
          %147 = sbr.rel (%p145) target = $region28
        $region27: #{tpu_custom_call.1} parent=23 // pred_region
          %s148 = sand.u32 %s36, 1
          %s149 = scalar_lea.sflag [#allocation5], %s148
          %s150 = sand.u32 %s36, 1
          %s151 = smul.addr %s150, 64
          %s152 = scalar_lea.vmem [#allocation4], %s151
          %s153 = smul.u32 2, %s20
          %155 = vsyncadd %s149, 0
          %s156 = smul.addr %s19, 8
          %s157 = sadd.s32 %s153, %s156
          %s158 = smul.addr %s157, 8
          %s159 = scalar_lea.hbm %s0, %s158
          %s160 = sshll.u32 %s159, 4
          %s161 = int_to_ptr.hbm [resolvable:$true] %s160
          %s162 = sshll.u32 %s152, 4
          %s163 = int_to_ptr.vmem [resolvable:$true] %s162
          %168 = dma.hbm_to_vmem [thread:$0]  %s161, 1024, %s163, %s149, 256, 256, 16
        $region28: #{tpu_custom_call.1} parent=23 // pred_fallthru
          _
      $region24: #{tpu_custom_call.1} parent=5 // pred_fallthru
        _
      %p169 = scmp.le.s32.totalorder 1, %s12
      %p170 = scmp.lt.s32.totalorder %s12, 3
      %p171 = pnand %p169, %p170
      %p172 = pneg %p171
      // Predicated region
      $region29: #{tpu_custom_call.1} parent=5 // pred_check
        _
      $region30: #{tpu_custom_call.1} parent=5 // pred_check_branch
        %174 = sbr.rel (%p171) target = $region32
      $region31: #{tpu_custom_call.1} parent=5 // pred_region
        %s175 = ssub.s32 %s12, 1
        %s176 = sand.u32 %s39, 1
        %s177 = scalar_lea.sflag [#allocation5], %s176
        %s178 = sand.u32 %s39, 1
        %s179 = smul.addr %s178, 64
        %s180 = scalar_lea.vmem [#allocation4], %s179
        // Predicated region
        $region33: #{tpu_custom_call.1} parent=31 // pred_check
          %p181 = pneg %p52
        $region34: #{tpu_custom_call.1} parent=31 // pred_check_branch
          %183 = sbr.rel (%p181) target = $region36
        $region35: #{tpu_custom_call.1} parent=31 // pred_region
          %185 = dma.done %s177, 1024
        $region36: #{tpu_custom_call.1} parent=31 // pred_fallthru
          _
        %s186 = sand.u32 %s39, 1
        %s187 = scalar_lea.sflag [#allocation5], %s186
        %s188 = sand.u32 %s39, 1
        %s189 = smul.addr %s188, 64
        %s190 = scalar_lea.vmem [#allocation4], %s189
        %p191 = pneg %p52
        %p192 = pneg %p49
        %p193 = pneg %p73
        %p194 = pneg %p70
        %p195 = pneg %p94
        %p196 = pneg %p91
        %p197 = pneg %p120
        %p198 = pneg %p117
        %p199 = scmp.lt.s32.totalorder %s21, 1
        %s200 = scalar_select %p199, %s21, 1
        %s201 = smul.addr %s200, 4
        %s202 = smul.addr %s201, 8
        %s203 = scalar_lea.vmem %s3, %s202
        %s204 = smul.u32 2, %s22
        %p205 = scmp.lt.s32.totalorder %s21, 1
        %s206 = scalar_select %p205, %s21, 1
        %s207 = smul.addr %s206, 4
        %s208 = smul.addr %s207, 8
        %s209 = scalar_lea.vmem %s3, %s208
        %p210 = scmp.eq.s32.totalorder %s22, 0
        // Predicated region
        $region37: #{tpu_custom_call.1} parent=31 // pred_check
          %p211 = pneg %p210
        $region38: #{tpu_custom_call.1} parent=31 // pred_check_branch
          %213 = sbr.rel (%p211) target = $region40
        $region39: #{tpu_custom_call.1} parent=31 // pred_region
          %214 = vst [vmem:[#allocation2] sm:$0xff] 0.0
          %215 = vst [vmem:[#allocation2 + $0x8] sm:$0xff] 0.0
          %216 = vst [vmem:[#allocation2 + $0x10] sm:$0xff] 0.0
          %217 = vst [vmem:[#allocation2 + $0x18] sm:$0xff] 0.0
          %218 = vst [vmem:[#allocation2 + $0x20] sm:$0xff] 0.0
          %219 = vst [vmem:[#allocation2 + $0x28] sm:$0xff] 0.0
          %220 = vst [vmem:[#allocation2 + $0x30] sm:$0xff] 0.0
          %221 = vst [vmem:[#allocation2 + $0x38] sm:$0xff] 0.0
          %222 = vst [vmem:[#allocation3] sm:$0xff] -inf
          %223 = vst [vmem:[#allocation3 + $0x8] sm:$0xff] -inf
          %224 = vst [vmem:[#allocation3 + $0x10] sm:$0xff] -inf
          %225 = vst [vmem:[#allocation3 + $0x18] sm:$0xff] -inf
          %226 = vst [vmem:[#allocation3 + $0x20] sm:$0xff] -inf
          %227 = vst [vmem:[#allocation3 + $0x28] sm:$0xff] -inf
          %228 = vst [vmem:[#allocation3 + $0x30] sm:$0xff] -inf
          %229 = vst [vmem:[#allocation3 + $0x38] sm:$0xff] -inf
        $region40: #{tpu_custom_call.1} parent=31 // pred_fallthru
          _
        %v230 = vld [vmem:[#allocation2] sm:$0xff]
        %v231 = vld [vmem:[#allocation2 + $0x8] sm:$0xff]
        %v232 = vld [vmem:[#allocation2 + $0x10] sm:$0xff]
        %v233 = vld [vmem:[#allocation2 + $0x18] sm:$0xff]
        %v234 = vld [vmem:[#allocation2 + $0x20] sm:$0xff]
        %v235 = vld [vmem:[#allocation2 + $0x28] sm:$0xff]
        %v236 = vld [vmem:[#allocation2 + $0x30] sm:$0xff]
        %v237 = vld [vmem:[#allocation2 + $0x38] sm:$0xff]
        %v238 = vld [vmem:[#allocation3] sm:$0xff]
        %v239 = vld [vmem:[#allocation3 + $0x8] sm:$0xff]
        %v240 = vld [vmem:[#allocation3 + $0x10] sm:$0xff]
        %v241 = vld [vmem:[#allocation3 + $0x18] sm:$0xff]
        %v242 = vld [vmem:[#allocation3 + $0x20] sm:$0xff]
        %v243 = vld [vmem:[#allocation3 + $0x28] sm:$0xff]
        %v244 = vld [vmem:[#allocation3 + $0x30] sm:$0xff]
        %v245 = vld [vmem:[#allocation3 + $0x38] sm:$0xff]
        %v246 = vld [vmem:[%s180] sm:$0xff]
        %v247 = vld [vmem:[%s180 + $0x8] sm:$0xff]
        %v248 = vld [vmem:[%s180 + $0x10] sm:$0xff]
        %v249 = vld [vmem:[%s180 + $0x18] sm:$0xff]
        %v250 = vld [vmem:[%s180 + $0x20] sm:$0xff]
        %v251 = vld [vmem:[%s180 + $0x28] sm:$0xff]
        %v252 = vld [vmem:[%s180 + $0x30] sm:$0xff]
        %v253 = vld [vmem:[%s180 + $0x38] sm:$0xff]
        %v254 = vadd.f32 %v230, %v246
        %v255 = vadd.f32 %v231, %v247
        %v256 = vadd.f32 %v232, %v248
        %v257 = vadd.f32 %v233, %v249
        %v258 = vadd.f32 %v234, %v250
        %v259 = vadd.f32 %v235, %v251
        %v260 = vadd.f32 %v236, %v252
        %v261 = vadd.f32 %v237, %v253
        %v262 = vmax.f32 %v238, %v246
        %v263 = vmax.f32 %v239, %v247
        %v264 = vmax.f32 %v240, %v248
        %v265 = vmax.f32 %v241, %v249
        %v266 = vmax.f32 %v242, %v250
        %v267 = vmax.f32 %v243, %v251
        %v268 = vmax.f32 %v244, %v252
        %v269 = vmax.f32 %v245, %v253
        %p270 = scmp.ne.s32.totalorder %s22, 0
        // Predicated region
        $region41: #{tpu_custom_call.1} parent=31 // pred_check
          %p271 = pneg %p270
        $region42: #{tpu_custom_call.1} parent=31 // pred_check_branch
          %273 = sbr.rel (%p271) target = $region44
        $region43: #{tpu_custom_call.1} parent=31 // pred_region
          %274 = vst [vmem:[#allocation2] sm:$0xff] %v254
          %275 = vst [vmem:[#allocation2 + $0x8] sm:$0xff] %v255
          %276 = vst [vmem:[#allocation2 + $0x10] sm:$0xff] %v256
          %277 = vst [vmem:[#allocation2 + $0x18] sm:$0xff] %v257
          %278 = vst [vmem:[#allocation2 + $0x20] sm:$0xff] %v258
          %279 = vst [vmem:[#allocation2 + $0x28] sm:$0xff] %v259
          %280 = vst [vmem:[#allocation2 + $0x30] sm:$0xff] %v260
          %281 = vst [vmem:[#allocation2 + $0x38] sm:$0xff] %v261
          %282 = vst [vmem:[#allocation3] sm:$0xff] %v262
          %283 = vst [vmem:[#allocation3 + $0x8] sm:$0xff] %v263
          %284 = vst [vmem:[#allocation3 + $0x10] sm:$0xff] %v264
          %285 = vst [vmem:[#allocation3 + $0x18] sm:$0xff] %v265
          %286 = vst [vmem:[#allocation3 + $0x20] sm:$0xff] %v266
          %287 = vst [vmem:[#allocation3 + $0x28] sm:$0xff] %v267
          %288 = vst [vmem:[#allocation3 + $0x30] sm:$0xff] %v268
          %289 = vst [vmem:[#allocation3 + $0x38] sm:$0xff] %v269
        $region44: #{tpu_custom_call.1} parent=31 // pred_fallthru
          _
        // Predicated region
        $region45: #{tpu_custom_call.1} parent=31 // pred_check
          %p290 = pneg %p210
        $region46: #{tpu_custom_call.1} parent=31 // pred_check_branch
          %292 = sbr.rel (%p290) target = $region48
        $region47: #{tpu_custom_call.1} parent=31 // pred_region
          %v293 = vadd.f32 %v254, %v255
          %294 = vadd.xlane.f32.xlu0 %v293
          %v295 = vpop.xlane.xlu0 %294
          %v296 = vadd.f32 %v256, %v257
          %297 = vadd.xlane.f32.xlu0 %v296
          %v298 = vpop.xlane.xlu0 %297
          %v299 = vadd.f32 %v258, %v259
          %300 = vadd.xlane.f32.xlu0 %v299
          %v301 = vpop.xlane.xlu0 %300
          %v302 = vadd.f32 %v260, %v261
          %303 = vadd.xlane.f32.xlu0 %v302
          %v304 = vpop.xlane.xlu0 %303
          %v305 = vmul.f32 %v295, 0.00390625
          %v306 = vmul.f32 %v298, 0.00390625
          %v307 = vmul.f32 %v301, 0.00390625
          %v308 = vmul.f32 %v304, 0.00390625
          %v309 = vmax.f32 %v262, %v263
          %310 = vmax.xlane.f32.xlu0 %v309
          %v311 = vpop.xlane.xlu0 %310
          %v312 = vmax.f32 %v264, %v265
          %313 = vmax.xlane.f32.xlu0 %v312
          %v314 = vpop.xlane.xlu0 %313
          %v315 = vmax.f32 %v266, %v267
          %316 = vmax.xlane.f32.xlu0 %v315
          %v317 = vpop.xlane.xlu0 %316
          %v318 = vmax.f32 %v268, %v269
          %319 = vmax.xlane.f32.xlu0 %v318
          %v320 = vpop.xlane.xlu0 %319
          %v321 = vlaneseq
          %v322 = vand.u32 %v321, 127
          %vm323 = vcmp.eq.s32.totalorder %v322, 0
          %v324 = vsel %vm323, %v305, %v311
          %v325 = vsel %vm323, %v306, %v314
          %v326 = vsel %vm323, %v307, %v317
          %v327 = vsel %vm323, %v308, %v320
          %v328 = vld [vmem:[%s1] sm:$0x3]
          %vm329 = vcmask 261120
          %v331 = vsel %vm329, %v328, 0
          %333 = vmatpush.msra.mxu0 0.0
          %334 = vmatpush.msra.mxu0 0.0
          %335 = vmatpush.msra.mxu0 0.0
          %336 = vmatpush.msra.mxu0 0.0
          %337 = vmatpush.msra.mxu0 0.0
          %338 = vmatpush.msra.mxu0 0.0
          %339 = vmatpush.msra.mxu0 0.0
          %340 = vmatpush.msra.mxu0 0.0
          %341 = vmatpush.msra.mxu0 0.0
          %342 = vmatpush.msra.mxu0 0.0
          %343 = vmatpush.msra.mxu0 0.0
          %344 = vmatpush.msra.mxu0 0.0
          %345 = vmatpush.msra.mxu0 %v327
          %346 = vmatpush.msra.mxu0 %v326
          %347 = vmatpush.msra.mxu0 %v325
          %348 = vmatpush.msra.mxu0 %v324
          %349 = vmatmul.f32.gmra.mxu0 %v331
          %v350 = vpop.f32.mrf.mxu0
          %v351 = vadd.f32 0.0, %v350
          %352 = vdwg.mxu0
          %v353 = vmax.f32 %v351, 0.0
          %v354 = vld [vmem:[%s2] sm:$0xff]
          %v355 = vld [vmem:[%s2 + $0x8] sm:$0xff]
          %v356 = vld [vmem:[%s2 + $0x10] sm:$0xff]
          %v357 = vld [vmem:[%s2 + $0x18] sm:$0xff]
          %vm358 = vcmask 15360
          %v360 = vsel %vm358, %v354, 0
          %v363 = vsel %vm358, %v355, 0
          %v366 = vsel %vm358, %v356, 0
          %v369 = vsel %vm358, %v357, 0
          %vm371 = vcmask 1041408
          %v373 = vsel %vm371, %v353, 0
          %375 = vmatpush.msra.mxu0 0.0
          %376 = vmatpush.msra.mxu0 0.0
          %377 = vmatpush.msra.mxu0 0.0
          %378 = vmatpush.msra.mxu0 0.0
          %379 = vmatpush.msra.mxu0 0.0
          %380 = vmatpush.msra.mxu0 0.0
          %381 = vmatpush.msra.mxu0 0.0
          %382 = vmatpush.msra.mxu0 0.0
          %383 = vmatpush.msra.mxu0 0.0
          %384 = vmatpush.msra.mxu0 0.0
          %385 = vmatpush.msra.mxu0 0.0
          %386 = vmatpush.msra.mxu0 0.0
          %387 = vmatpush.msra.mxu0 0.0
          %388 = vmatpush.msra.mxu0 0.0
          %389 = vmatpush.msra.mxu0 0.0
          %390 = vmatpush.msra.mxu0 %v373
          %391 = vmatmul.f32.gmra.mxu0 %v360
          %v392 = vpop.f32.mrf.mxu0
          %v393 = vadd.f32 0.0, %v392
          %394 = vmatmul.f32.gmra.mxu0 %v363
          %v395 = vpop.f32.mrf.mxu0
          %v396 = vadd.f32 0.0, %v395
          %397 = vmatmul.f32.gmra.mxu0 %v366
          %v398 = vpop.f32.mrf.mxu0
          %v399 = vadd.f32 0.0, %v398
          %400 = vmatmul.f32.gmra.mxu0 %v369
          %v401 = vpop.f32.mrf.mxu0
          %v402 = vadd.f32 0.0, %v401
          %403 = vdwg.mxu0
          %v404 = vsel %vm358, %v393, 0.0
          %405 = vadd.xlane.f32.xlu0 %v404
          %v406 = vpop.xlane.xlu0 %405
          %v407 = vsel %vm358, %v396, 0.0
          %408 = vadd.xlane.f32.xlu0 %v407
          %v409 = vpop.xlane.xlu0 %408
          %v410 = vsel %vm358, %v399, 0.0
          %411 = vadd.xlane.f32.xlu0 %v410
          %v412 = vpop.xlane.xlu0 %411
          %v413 = vsel %vm358, %v402, 0.0
          %414 = vadd.xlane.f32.xlu0 %v413
          %v415 = vpop.xlane.xlu0 %414
          %v416 = vxor.u32 %v406, 2147483648
          %v417 = vxor.u32 %v409, 2147483648
          %v418 = vxor.u32 %v412, 2147483648
          %v419 = vxor.u32 %v415, 2147483648
          %v420 = vmul.f32 %v416, 1.442695
          %v421 = vpow.pop %v420
          %v422 = vmul.f32 %v417, 1.442695
          %v423 = vpow.pop %v422
          %v424 = vmul.f32 %v418, 1.442695
          %v425 = vpow.pop %v424
          %v426 = vmul.f32 %v419, 1.442695
          %v427 = vpow.pop %v426
          %v428 = vadd.f32 %v421, 1.0
          %v429 = vadd.f32 %v423, 1.0
          %v430 = vadd.f32 %v425, 1.0
          %v431 = vadd.f32 %v427, 1.0
          %v432 = vrcp.pop %v428
          %v433 = vmul.f32 %v428, %v432
          %v434 = vsub.f32 1.0, %v433
          %v435 = vmul.f32 %v432, %v434
          %v436 = vadd.f32 %v432, %v435
          %vm437 = vweird.f32 %v428
          %vm438 = vweird.f32 %v432
          %vm439 = vmor %vm437, %vm438
          %v440 = vsel %vm439, %v432, %v436
          %v441 = vand.u32 2147483647, %v428
          %vm442 = vcmp.eq.f32.partialorder %v441, 8.507059e+37
          %v443 = vand.u32 %v428, 2147483648
          %v444 = vor.u32 1.1754944e-38, %v443
          %v445 = vsel %vm442, %v444, %v440
          %v446 = vmul.f32 1.0, %v445
          %v447 = vrcp.pop %v429
          %v448 = vmul.f32 %v429, %v447
          %v449 = vsub.f32 1.0, %v448
          %v450 = vmul.f32 %v447, %v449
          %v451 = vadd.f32 %v447, %v450
          %vm452 = vweird.f32 %v429
          %vm453 = vweird.f32 %v447
          %vm454 = vmor %vm452, %vm453
          %v455 = vsel %vm454, %v447, %v451
          %v456 = vand.u32 2147483647, %v429
          %vm457 = vcmp.eq.f32.partialorder %v456, 8.507059e+37
          %v458 = vand.u32 %v429, 2147483648
          %v459 = vor.u32 1.1754944e-38, %v458
          %v460 = vsel %vm457, %v459, %v455
          %v461 = vmul.f32 1.0, %v460
          %v462 = vrcp.pop %v430
          %v463 = vmul.f32 %v430, %v462
          %v464 = vsub.f32 1.0, %v463
          %v465 = vmul.f32 %v462, %v464
          %v466 = vadd.f32 %v462, %v465
          %vm467 = vweird.f32 %v430
          %vm468 = vweird.f32 %v462
          %vm469 = vmor %vm467, %vm468
          %v470 = vsel %vm469, %v462, %v466
          %v471 = vand.u32 2147483647, %v430
          %vm472 = vcmp.eq.f32.partialorder %v471, 8.507059e+37
          %v473 = vand.u32 %v430, 2147483648
          %v474 = vor.u32 1.1754944e-38, %v473
          %v475 = vsel %vm472, %v474, %v470
          %v476 = vmul.f32 1.0, %v475
          %v477 = vrcp.pop %v431
          %v478 = vmul.f32 %v431, %v477
          %v479 = vsub.f32 1.0, %v478
          %v480 = vmul.f32 %v477, %v479
          %v481 = vadd.f32 %v477, %v480
          %vm482 = vweird.f32 %v431
          %vm483 = vweird.f32 %v477
          %vm484 = vmor %vm482, %vm483
          %v485 = vsel %vm484, %v477, %v481
          %v486 = vand.u32 2147483647, %v431
          %vm487 = vcmp.eq.f32.partialorder %v486, 8.507059e+37
          %v488 = vand.u32 %v431, 2147483648
          %v489 = vor.u32 1.1754944e-38, %v488
          %v490 = vsel %vm487, %v489, %v485
          %v491 = vmul.f32 1.0, %v490
          %vm492 = vcmask 7168
          %493 = vst.msk [vmem:[%s209] sm:$0xff] %vm492, %v446
          %494 = vst.msk [vmem:[%s209 + $0x8] sm:$0xff] %vm492, %v461
          %495 = vst.msk [vmem:[%s209 + $0x10] sm:$0xff] %vm492, %v476
          %496 = vst.msk [vmem:[%s209 + $0x18] sm:$0xff] %vm492, %v491
        $region48: #{tpu_custom_call.1} parent=31 // pred_fallthru
          _
        %p497 = scmp.lt.s32.totalorder %s21, 1
        %s498 = scalar_select %p497, %s21, 1
        %s499 = smul.addr %s498, 4
        %s500 = smul.addr %s499, 8
        %s501 = scalar_lea.vmem %s3, %s500
        // Predicated region
        $region49: #{tpu_custom_call.1} parent=31 // pred_check
          %p502 = pneg %p117
        $region50: #{tpu_custom_call.1} parent=31 // pred_check_branch
          %504 = sbr.rel (%p502) target = $region52
        $region51: #{tpu_custom_call.1} parent=31 // pred_region
          _
        $region52: #{tpu_custom_call.1} parent=31 // pred_fallthru
          _
      $region32: #{tpu_custom_call.1} parent=5 // pred_fallthru
        _
      %p505 = scmp.le.s32.totalorder 2, %s12
      // Predicated region
      $region53: #{tpu_custom_call.1} parent=5 // pred_check
        %p506 = pneg %p505
      $region54: #{tpu_custom_call.1} parent=5 // pred_check_branch
        %508 = sbr.rel (%p506) target = $region56
      $region55: #{tpu_custom_call.1} parent=5 // pred_region
        %s509 = ssub.s32 %s12, 2
        // Predicated region
        $region57: #{tpu_custom_call.1} parent=55 // pred_check
          %p510 = pneg %p123
        $region58: #{tpu_custom_call.1} parent=55 // pred_check_branch
          %512 = sbr.rel (%p510) target = $region60
        $region59: #{tpu_custom_call.1} parent=55 // pred_region
          %p513 = scmp.lt.s32.totalorder %s23, 1
          %s514 = scalar_select %p513, %s23, 1
          %s515 = smul.addr %s514, 4
          %s516 = smul.addr %s515, 8
          %s517 = scalar_lea.vmem %s3, %s516
        $region60: #{tpu_custom_call.1} parent=55 // pred_fallthru
          _
      $region56: #{tpu_custom_call.1} parent=5 // pred_fallthru
        _
    $region6: #{tpu_custom_call.1} parent=1 // loop_footer
      %s16 = sadd.s32 1, %s12
    $region7: #{tpu_custom_call.1} parent=1 // loop_footer_branch
      %11 = sbr.rel target = $region3
    $region8: #{tpu_custom_call.1} parent=1 // loop_exit
      _
    %518 = vsyncpa [#allocation5], 1
    %s519 = scalar_lea.sflag [#allocation5], 1
    %520 = vsyncpa %s519, 1

</llo_original>
